<compile_context>
chip_gen: v5e
topology: v5e:2x2
jax: 0.10.0
libtpu: 0.0.40
codegen_flags: <defaults>
</compile_context>

<pallas_src>
import jax
import jax.numpy as jnp
from jax.experimental import pallas as pl
from jax.experimental.pallas import tpu as pltpu

EPS = 1e-5
OUT_DTYPE = jnp.bfloat16            # downstream UNet consumes bf16; epilogue stays f32

_LANE = 128
_TARGET_STEP_BYTES = 2 * 1024 * 1024   # aim for >= ~2 MiB HBM traffic per grid step
_VMEM_TILE_BUDGET = 16 * 1024 * 1024   # double-buffered tiles + f32 intermediates
_VMEM_LIMIT_BYTES = 32 * 1024 * 1024   # safe on v5e/v6e (128 MiB) and v7x (64 MiB)
_MAX_NB = 8                             # cap batch-merge (static unroll length)


def _round_up(x, m):
    return -(-x // m) * m


def _largest_divisor_leq(n, cap):
    cap = max(1, min(n, cap))
    for d in range(cap, 0, -1):
        if n % d == 0:
            return d
    return 1


def _plan_tiles(N, Cin, Cout, HW):
    """Pick (nb, tm, hw_pad): each grid step processes nb images x tm pixels."""
    px = 2 * Cin * 4 + Cout * 2                # f32 g+s in, bf16 out, per pixel
    vmem_px = 2 * px + 3 * Cout * 4            # double-buffered tiles + f32 interm.
    tm_cap = max(_LANE, (_VMEM_TILE_BUDGET // vmem_px) // _LANE * _LANE)
    tm_want = max(_LANE, _round_up(_TARGET_STEP_BYTES // px + 1, _LANE))
    tm = min(tm_cap, tm_want)
    hw_pad = _round_up(HW, _LANE)
    if hw_pad <= tm:
        # Whole (padded) image fits one tile -> merge batch to amortize step overhead.
        tm = hw_pad
        want_nb = max(1, _TARGET_STEP_BYTES // (tm * px))
        cap_nb = max(1, _VMEM_TILE_BUDGET // (tm * vmem_px))
        nb = _largest_divisor_leq(N, min(_MAX_NB, want_nb, cap_nb))
    else:
        nb = 1
        hw_pad = _round_up(hw_pad, tm)
    return nb, tm, hw_pad


# ---------------------------------------------------------------------------
# Fused AttentionGate kernel.  One grid step = nb batch images x tm pixels,
# channels-first (lane-dense) layout.  Everything stays in VMEM.
# ---------------------------------------------------------------------------
def _make_kernel(nb):
    def kernel(g_ref, s_ref, wg_ref, wx_ref, bg_ref, bx_ref,
               wpsi_ref, bpsi_ref, o_ref):
        wg = wg_ref[...]                          # (Cout, Cin) bf16 (BN folded)
        wx = wx_ref[...]
        bg = bg_ref[...]                          # (Cout, 1)   f32 (BN folded)
        bx = bx_ref[...]
        wpsi = wpsi_ref[...]                      # (Cout, 1)   f32 (BN folded)
        bpsi = bpsi_ref[...]                      # (1, 1)      f32
        for b in range(nb):                       # static unroll over merged batch
            g = g_ref[b].astype(jnp.bfloat16)     # in-kernel cast: HBM stays f32
            s = s_ref[b].astype(jnp.bfloat16)
            g1 = jnp.dot(wg, g, preferred_element_type=jnp.float32) + bg
            s1 = jnp.dot(wx, s, preferred_element_type=jnp.float32) + bx
            r = jnp.maximum(g1 + s1, 0.0)         # (Cout, tm) f32
            lin = jnp.sum(r * wpsi, axis=0, keepdims=True) + bpsi   # (1, tm)
            psi = jax.nn.sigmoid(lin)
            o_ref[b] = (s1 * psi).astype(o_ref.dtype)   # lane-dense bf16 store
    return kernel


def _fold_bn(gamma, beta, mean, var):
    scale = gamma / jnp.sqrt(var + EPS)
    shift = beta - mean * scale
    return scale, shift


@jax.jit
def attention_gate(params, g_nchw, s_nchw):
    N, Cin, H, W = g_nchw.shape
    Cout = params["wg"].shape[0]
    HW = H * W
    nb, tm, hw_pad = _plan_tiles(N, Cin, Cout, HW)
    grid = (N // nb, hw_pad // tm)

    # --- fold eval-mode BatchNorm + conv bias into weights / bias vectors ---
    sg, shg = _fold_bn(**params["bn_g"])
    sx, shx = _fold_bn(**params["bn_x"])
    sp, shp = _fold_bn(**params["bn_psi"])
    wg_f = (sg[:, None] * params["wg"]).astype(jnp.bfloat16)              # (Cout, Cin)
    wx_f = (sx[:, None] * params["wx"]).astype(jnp.bfloat16)              # (Cout, Cin)
    bg_f = (shg + params["bg"] * sg).reshape(Cout, 1).astype(jnp.float32)
    bx_f = (shx + params["bx"] * sx).reshape(Cout, 1).astype(jnp.float32)
    wpsi_f = (sp[0] * params["wpsi"][0]).reshape(Cout, 1).astype(jnp.float32)
    bpsi_f = (shp + params["bpsi"] * sp).reshape(1, 1).astype(jnp.float32)

    # Channels-first flat layout (free reshape of NCHW); inputs stay f32 in HBM.
    g = g_nchw.reshape(N, Cin, HW)
    s = s_nchw.reshape(N, Cin, HW)
    if hw_pad != HW:
        pad = ((0, 0), (0, 0), (0, hw_pad - HW))
        g = jnp.pad(g, pad)
        s = jnp.pad(s, pad)

    out = pl.pallas_call(
        _make_kernel(nb),
        out_shape=jax.ShapeDtypeStruct((N, Cout, hw_pad), OUT_DTYPE),
        grid=grid,
        in_specs=[
            pl.BlockSpec((nb, Cin, tm), lambda n, i: (n, 0, i)),   # g tile (f32)
            pl.BlockSpec((nb, Cin, tm), lambda n, i: (n, 0, i)),   # s tile (f32)
            pl.BlockSpec((Cout, Cin), lambda n, i: (0, 0)),        # folded W_g
            pl.BlockSpec((Cout, Cin), lambda n, i: (0, 0)),        # folded W_x
            pl.BlockSpec((Cout, 1), lambda n, i: (0, 0)),          # folded bias_g
            pl.BlockSpec((Cout, 1), lambda n, i: (0, 0)),          # folded bias_x
            pl.BlockSpec((Cout, 1), lambda n, i: (0, 0)),          # folded w_psi
            pl.BlockSpec((1, 1), lambda n, i: (0, 0)),             # folded b_psi
        ],
        out_specs=pl.BlockSpec((nb, Cout, tm), lambda n, i: (n, 0, i)),
        compiler_params=pltpu.CompilerParams(
            dimension_semantics=("parallel", "parallel"),
            vmem_limit_bytes=_VMEM_LIMIT_BYTES,
        ),
    )(g, s, wg_f, wx_f, bg_f, bx_f, wpsi_f, bpsi_f)

    return out[:, :, :HW].reshape(N, Cout, H, W)


# ---------------------------------------------------------------------------
# Pure-JAX reference (PyTorch semantics, unfolded params, f32) for validation.
# ---------------------------------------------------------------------------
def attention_gate_ref(params, g, s):
    def conv1x1(x, w, b):                    # x: (N,C,H,W), w: (Cout,Cin)
        return jnp.einsum("nchw,oc->nohw", x, w) + b[None, :, None, None]

    def bn(x, p):
        scale = p["gamma"] / jnp.sqrt(p["var"] + EPS)
        shift = p["beta"] - p["mean"] * scale
        return x * scale[None, :, None, None] + shift[None, :, None, None]

    g1 = bn(conv1x1(g, params["wg"], params["bg"]), params["bn_g"])
    s1 = bn(conv1x1(s, params["wx"], params["bx"]), params["bn_x"])
    r = jnp.maximum(g1 + s1, 0.0)
    psi = jax.nn.sigmoid(bn(conv1x1(r, params["wpsi"], params["bpsi"]), params["bn_psi"]))
    return s1 * psi


# ---------------------------------------------------------------------------
# Deterministic synthetic parameters (Conv2d 1x1 weights/bias + eval-mode BN).
# ---------------------------------------------------------------------------
def init_params(key, cin, cout):
    ks = jax.random.split(key, 9)

    def bn_stats(k, c):
        k1, k2, k3, k4 = jax.random.split(k, 4)
        return dict(
            gamma=1.0 + 0.1 * jax.random.normal(k1, (c,), jnp.float32),
            beta=0.1 * jax.random.normal(k2, (c,), jnp.float32),
            mean=0.1 * jax.random.normal(k3, (c,), jnp.float32),
            var=0.9 + 0.2 * jax.random.uniform(k4, (c,), jnp.float32),
        )

    return dict(
        wg=0.1 * jax.random.normal(ks[0], (cout, cin), jnp.float32),
        bg=0.1 * jax.random.normal(ks[1], (cout,), jnp.float32),
        bn_g=bn_stats(ks[2], cout),
        wx=0.1 * jax.random.normal(ks[3], (cout, cin), jnp.float32),
        bx=0.1 * jax.random.normal(ks[4], (cout,), jnp.float32),
        bn_x=bn_stats(ks[5], cout),
        wpsi=0.1 * jax.random.normal(ks[6], (1, cout), jnp.float32),
        bpsi=0.1 * jax.random.normal(ks[7], (1,), jnp.float32),
        bn_psi=bn_stats(ks[8], 1),
    )


if __name__ == "__main__":
    key = jax.random.PRNGKey(0)
    kp, kg, ks = jax.random.split(key, 3)
    N, Cin, Cout, H, W = 2, 32, 32, 16, 16
    params = init_params(kp, Cin, Cout)
    g = jax.random.normal(kg, (N, Cin, H, W), jnp.float32)
    s = jax.random.normal(ks, (N, Cin, H, W), jnp.float32)

    out = attention_gate(params, g, s)
    out = jax.block_until_ready(out)
    assert out.shape == (N, Cout, H, W), out.shape

    out_f32 = out.astype(jnp.float32)
    assert bool(jnp.all(jnp.isfinite(out_f32)))

    ref = attention_gate_ref(params, g, s)
    max_err = float(jnp.max(jnp.abs(out_f32 - ref)))
    # bf16 MXU operands + bf16 output store; accumulate/epilogue in f32.
    assert max_err < 1e-1, max_err
    print("KERNEL_OK")
</pallas_src>

<mosaic_0001>
module attributes {stable_mosaic.version = 11 : i64} {
  func.func @kernel(%arg0: i32, %arg1: i32, %arg2: memref<2x32x256xf32, #tpu.memory_space<vmem>>, %arg3: memref<2x32x256xf32, #tpu.memory_space<vmem>>, %arg4: memref<32x32xbf16, #tpu.memory_space<vmem>>, %arg5: memref<32x32xbf16, #tpu.memory_space<vmem>>, %arg6: memref<32x1xf32, #tpu.memory_space<vmem>>, %arg7: memref<32x1xf32, #tpu.memory_space<vmem>>, %arg8: memref<32x1xf32, #tpu.memory_space<vmem>>, %arg9: memref<1x1xf32, #tpu.memory_space<vmem>>, %arg10: memref<2x32x256xbf16, #tpu.memory_space<vmem>>) attributes {dimension_semantics = [#tpu.dimension_semantics<parallel>, #tpu.dimension_semantics<parallel>], iteration_bounds = array<i64: 1, 1>, scalar_prefetch = 0 : i64, scratch_operands = 0 : i64, tpu.core_type = #tpu.core_type<tc>, window_params = [{transform_indices = @transform_0, window_bounds = array<i64: 2, 32, 256>}, {transform_indices = @transform_1, window_bounds = array<i64: 2, 32, 256>}, {pipeline_mode = #tpu.pipeline_mode<synchronous>, transform_indices = @transform_2, window_bounds = array<i64: 32, 32>}, {pipeline_mode = #tpu.pipeline_mode<synchronous>, transform_indices = @transform_3, window_bounds = array<i64: 32, 32>}, {pipeline_mode = #tpu.pipeline_mode<synchronous>, transform_indices = @transform_4, window_bounds = array<i64: 32, 1>}, {pipeline_mode = #tpu.pipeline_mode<synchronous>, transform_indices = @transform_5, window_bounds = array<i64: 32, 1>}, {pipeline_mode = #tpu.pipeline_mode<synchronous>, transform_indices = @transform_6, window_bounds = array<i64: 32, 1>}, {pipeline_mode = #tpu.pipeline_mode<synchronous>, transform_indices = @transform_7, window_bounds = array<i64: 1, 1>}, {transform_indices = @transform_8, window_bounds = array<i64: 2, 32, 256>}]} {
    %c0 = arith.constant 0 : index
    %c0_0 = arith.constant 0 : index
    %0 = vector.load %arg4[%c0, %c0_0] : memref<32x32xbf16, #tpu.memory_space<vmem>>, vector<32x32xbf16>
    %c0_1 = arith.constant 0 : index
    %c0_2 = arith.constant 0 : index
    %1 = vector.load %arg5[%c0_1, %c0_2] : memref<32x32xbf16, #tpu.memory_space<vmem>>, vector<32x32xbf16>
    %c0_3 = arith.constant 0 : index
    %c0_4 = arith.constant 0 : index
    %2 = vector.load %arg6[%c0_3, %c0_4] : memref<32x1xf32, #tpu.memory_space<vmem>>, vector<32x1xf32>
    %c0_5 = arith.constant 0 : index
    %c0_6 = arith.constant 0 : index
    %3 = vector.load %arg7[%c0_5, %c0_6] : memref<32x1xf32, #tpu.memory_space<vmem>>, vector<32x1xf32>
    %c0_7 = arith.constant 0 : index
    %c0_8 = arith.constant 0 : index
    %4 = vector.load %arg8[%c0_7, %c0_8] : memref<32x1xf32, #tpu.memory_space<vmem>>, vector<32x1xf32>
    %c0_9 = arith.constant 0 : index
    %c0_10 = arith.constant 0 : index
    %5 = vector.load %arg9[%c0_9, %c0_10] : memref<1x1xf32, #tpu.memory_space<vmem>>, vector<1x1xf32>
    %c0_11 = arith.constant 0 : index
    %c0_12 = arith.constant 0 : index
    %c0_13 = arith.constant 0 : index
    %6 = vector.load %arg2[%c0_11, %c0_12, %c0_13] : memref<2x32x256xf32, #tpu.memory_space<vmem>>, vector<1x32x256xf32>
    %7 = vector.shape_cast %6 : vector<1x32x256xf32> to vector<32x256xf32>
    %8 = arith.truncf %7 : vector<32x256xf32> to vector<32x256xbf16>
    %c0_14 = arith.constant 0 : index
    %c0_15 = arith.constant 0 : index
    %c0_16 = arith.constant 0 : index
    %9 = vector.load %arg3[%c0_14, %c0_15, %c0_16] : memref<2x32x256xf32, #tpu.memory_space<vmem>>, vector<1x32x256xf32>
    %10 = vector.shape_cast %9 : vector<1x32x256xf32> to vector<32x256xf32>
    %11 = arith.truncf %10 : vector<32x256xf32> to vector<32x256xbf16>
    %cst = arith.constant dense<0.000000e+00> : vector<32x256xf32>
    %12 = tpu.matmul %0, %8, %cst {dimension_numbers = #tpu.dot_dimension_numbers<[1], [0], [0], [1], [0, 0, 1, 1], [], []>} : vector<32x32xbf16>, vector<32x256xbf16>, vector<32x256xf32> -> vector<32x256xf32>
    %13 = vector.broadcast %2 : vector<32x1xf32> to vector<32x256xf32>
    %14 = arith.addf %12, %13 : vector<32x256xf32>
    %cst_17 = arith.constant dense<0.000000e+00> : vector<32x256xf32>
    %15 = tpu.matmul %1, %11, %cst_17 {dimension_numbers = #tpu.dot_dimension_numbers<[1], [0], [0], [1], [0, 0, 1, 1], [], []>} : vector<32x32xbf16>, vector<32x256xbf16>, vector<32x256xf32> -> vector<32x256xf32>
    %16 = vector.broadcast %3 : vector<32x1xf32> to vector<32x256xf32>
    %17 = arith.addf %15, %16 : vector<32x256xf32>
    %18 = arith.addf %14, %17 : vector<32x256xf32>
    %cst_18 = arith.constant 0.000000e+00 : f32
    %19 = vector.broadcast %cst_18 : f32 to vector<32x256xf32>
    %20 = arith.maximumf %18, %19 : vector<32x256xf32>
    %21 = vector.broadcast %4 : vector<32x1xf32> to vector<32x256xf32>
    %22 = arith.mulf %20, %21 : vector<32x256xf32>
    %cst_19 = arith.constant dense<0.000000e+00> : vector<256xf32>
    %23 = vector.multi_reduction <add>, %22, %cst_19 [0] : vector<32x256xf32> to vector<256xf32>
    %24 = vector.shape_cast %23 : vector<256xf32> to vector<1x256xf32>
    %25 = vector.broadcast %5 : vector<1x1xf32> to vector<1x256xf32>
    %26 = arith.addf %24, %25 : vector<1x256xf32>
    %27 = arith.negf %26 : vector<1x256xf32>
    %28 = math.exp %27 : vector<1x256xf32>
    %cst_20 = arith.constant 1.000000e+00 : f32
    %29 = vector.broadcast %cst_20 : f32 to vector<1x256xf32>
    %30 = arith.addf %29, %28 : vector<1x256xf32>
    %31 = arith.divf %29, %30 : vector<1x256xf32>
    %32 = vector.broadcast %31 : vector<1x256xf32> to vector<32x256xf32>
    %33 = arith.mulf %17, %32 : vector<32x256xf32>
    %34 = arith.truncf %33 : vector<32x256xf32> to vector<32x256xbf16>
    %c0_21 = arith.constant 0 : index
    %c0_22 = arith.constant 0 : index
    %c0_23 = arith.constant 0 : index
    %35 = vector.load %arg10[%c0_21, %c0_22, %c0_23] : memref<2x32x256xbf16, #tpu.memory_space<vmem>>, vector<1x32x256xbf16>
    %36 = vector.shape_cast %35 : vector<1x32x256xbf16> to vector<32x256xbf16>
    %37 = vector.shape_cast %34 : vector<32x256xbf16> to vector<1x32x256xbf16>
    tpu.vector_store %arg10[%c0_21, %c0_22, %c0_23], %37 {strides = array<i32>} : memref<2x32x256xbf16, #tpu.memory_space<vmem>>, vector<1x32x256xbf16>,
    %c1 = arith.constant 1 : index
    %c0_24 = arith.constant 0 : index
    %c0_25 = arith.constant 0 : index
    %38 = vector.load %arg2[%c1, %c0_24, %c0_25] : memref<2x32x256xf32, #tpu.memory_space<vmem>>, vector<1x32x256xf32>
    %39 = vector.shape_cast %38 : vector<1x32x256xf32> to vector<32x256xf32>
    %40 = arith.truncf %39 : vector<32x256xf32> to vector<32x256xbf16>
    %c1_26 = arith.constant 1 : index
    %c0_27 = arith.constant 0 : index
    %c0_28 = arith.constant 0 : index
    %41 = vector.load %arg3[%c1_26, %c0_27, %c0_28] : memref<2x32x256xf32, #tpu.memory_space<vmem>>, vector<1x32x256xf32>
    %42 = vector.shape_cast %41 : vector<1x32x256xf32> to vector<32x256xf32>
    %43 = arith.truncf %42 : vector<32x256xf32> to vector<32x256xbf16>
    %cst_29 = arith.constant dense<0.000000e+00> : vector<32x256xf32>
    %44 = tpu.matmul %0, %40, %cst_29 {dimension_numbers = #tpu.dot_dimension_numbers<[1], [0], [0], [1], [0, 0, 1, 1], [], []>} : vector<32x32xbf16>, vector<32x256xbf16>, vector<32x256xf32> -> vector<32x256xf32>
    %45 = vector.broadcast %2 : vector<32x1xf32> to vector<32x256xf32>
    %46 = arith.addf %44, %45 : vector<32x256xf32>
    %cst_30 = arith.constant dense<0.000000e+00> : vector<32x256xf32>
    %47 = tpu.matmul %1, %43, %cst_30 {dimension_numbers = #tpu.dot_dimension_numbers<[1], [0], [0], [1], [0, 0, 1, 1], [], []>} : vector<32x32xbf16>, vector<32x256xbf16>, vector<32x256xf32> -> vector<32x256xf32>
    %48 = vector.broadcast %3 : vector<32x1xf32> to vector<32x256xf32>
    %49 = arith.addf %47, %48 : vector<32x256xf32>
    %50 = arith.addf %46, %49 : vector<32x256xf32>
    %cst_31 = arith.constant 0.000000e+00 : f32
    %51 = vector.broadcast %cst_31 : f32 to vector<32x256xf32>
    %52 = arith.maximumf %50, %51 : vector<32x256xf32>
    %53 = vector.broadcast %4 : vector<32x1xf32> to vector<32x256xf32>
    %54 = arith.mulf %52, %53 : vector<32x256xf32>
    %cst_32 = arith.constant dense<0.000000e+00> : vector<256xf32>
    %55 = vector.multi_reduction <add>, %54, %cst_32 [0] : vector<32x256xf32> to vector<256xf32>
    %56 = vector.shape_cast %55 : vector<256xf32> to vector<1x256xf32>
    %57 = vector.broadcast %5 : vector<1x1xf32> to vector<1x256xf32>
    %58 = arith.addf %56, %57 : vector<1x256xf32>
    %59 = arith.negf %58 : vector<1x256xf32>
    %60 = math.exp %59 : vector<1x256xf32>
    %cst_33 = arith.constant 1.000000e+00 : f32
    %61 = vector.broadcast %cst_33 : f32 to vector<1x256xf32>
    %62 = arith.addf %61, %60 : vector<1x256xf32>
    %63 = arith.divf %61, %62 : vector<1x256xf32>
    %64 = vector.broadcast %63 : vector<1x256xf32> to vector<32x256xf32>
    %65 = arith.mulf %49, %64 : vector<32x256xf32>
    %66 = arith.truncf %65 : vector<32x256xf32> to vector<32x256xbf16>
    %c1_34 = arith.constant 1 : index
    %c0_35 = arith.constant 0 : index
    %c0_36 = arith.constant 0 : index
    %67 = vector.load %arg10[%c1_34, %c0_35, %c0_36] : memref<2x32x256xbf16, #tpu.memory_space<vmem>>, vector<1x32x256xbf16>
    %68 = vector.shape_cast %67 : vector<1x32x256xbf16> to vector<32x256xbf16>
    %69 = vector.shape_cast %66 : vector<32x256xbf16> to vector<1x32x256xbf16>
    tpu.vector_store %arg10[%c1_34, %c0_35, %c0_36], %69 {strides = array<i32>} : memref<2x32x256xbf16, #tpu.memory_space<vmem>>, vector<1x32x256xbf16>,
    return
  }
  func.func @transform_0(%arg0: i32, %arg1: i32) -> (i32, i32, i32) {
    %c0_i32 = arith.constant 0 : i32
    %c0_i32_0 = arith.constant 0 : i32
    return %arg0, %c0_i32, %arg1 : i32, i32, i32
  }
  func.func @transform_1(%arg0: i32, %arg1: i32) -> (i32, i32, i32) {
    %c0_i32 = arith.constant 0 : i32
    %c0_i32_0 = arith.constant 0 : i32
    return %arg0, %c0_i32, %arg1 : i32, i32, i32
  }
  func.func @transform_2(%arg0: i32, %arg1: i32) -> (i32, i32) {
    %c0_i32 = arith.constant 0 : i32
    %c0_i32_0 = arith.constant 0 : i32
    %c0_i32_1 = arith.constant 0 : i32
    return %c0_i32, %c0_i32_0 : i32, i32
  }
  func.func @transform_3(%arg0: i32, %arg1: i32) -> (i32, i32) {
    %c0_i32 = arith.constant 0 : i32
    %c0_i32_0 = arith.constant 0 : i32
    %c0_i32_1 = arith.constant 0 : i32
    return %c0_i32, %c0_i32_0 : i32, i32
  }
  func.func @transform_4(%arg0: i32, %arg1: i32) -> (i32, i32) {
    %c0_i32 = arith.constant 0 : i32
    %c0_i32_0 = arith.constant 0 : i32
    %c0_i32_1 = arith.constant 0 : i32
    return %c0_i32, %c0_i32_0 : i32, i32
  }
  func.func @transform_5(%arg0: i32, %arg1: i32) -> (i32, i32) {
    %c0_i32 = arith.constant 0 : i32
    %c0_i32_0 = arith.constant 0 : i32
    %c0_i32_1 = arith.constant 0 : i32
    return %c0_i32, %c0_i32_0 : i32, i32
  }
  func.func @transform_6(%arg0: i32, %arg1: i32) -> (i32, i32) {
    %c0_i32 = arith.constant 0 : i32
    %c0_i32_0 = arith.constant 0 : i32
    %c0_i32_1 = arith.constant 0 : i32
    return %c0_i32, %c0_i32_0 : i32, i32
  }
  func.func @transform_7(%arg0: i32, %arg1: i32) -> (i32, i32) {
    %c0_i32 = arith.constant 0 : i32
    %c0_i32_0 = arith.constant 0 : i32
    %c0_i32_1 = arith.constant 0 : i32
    return %c0_i32, %c0_i32_0 : i32, i32
  }
  func.func @transform_8(%arg0: i32, %arg1: i32) -> (i32, i32, i32) {
    %c0_i32 = arith.constant 0 : i32
    %c0_i32_0 = arith.constant 0 : i32
    return %arg0, %c0_i32, %arg1 : i32, i32, i32
  }
}

</mosaic_0001>

<llo_original>
// kernel: attention_gate.1
$region0: #{attention_gate.1}
  #allocation0 [shape = 'u32[]', space=smem, size = 0x4, offset = 0x4, fixed_abs, tag = 'smem constant byte address 0x4 - core index']
  #allocation1 [shape = 'u32[72,128]{1,0:T(1,128)}', space=vmem, size = 0x9000, scoped, tag = 'internal scratch']
  #allocation2 [shape = 'f32[1,1]{1,0:T(1,128)S(1)}', space=vmem, size = 0x200, scoped, tag = 'scoped memory for attention_gate.1']
  %s0 = inlined_call_operand.vmem [shape: f32[2,32,256], index: 0, kind: input, shape index: {}]
  %s1 = inlined_call_operand.vmem [shape: f32[2,32,256], index: 1, kind: input, shape index: {}]
  %s2 = inlined_call_operand.vmem [shape: bf16[32,32], index: 2, kind: input, shape index: {}]
  %s3 = inlined_call_operand.vmem [shape: bf16[32,32], index: 3, kind: input, shape index: {}]
  %s4 = inlined_call_operand.vmem [shape: f32[32,1], index: 4, kind: input, shape index: {}]
  %s5 = inlined_call_operand.vmem [shape: f32[32,1], index: 5, kind: input, shape index: {}]
  %s6 = inlined_call_operand.vmem [shape: f32[32,1], index: 6, kind: input, shape index: {}]
  %s7 = inlined_call_operand.<no memory space> [shape: f32[1,1], index: 7, kind: input, shape index: {}]
  %s8 = inlined_call_operand.vmem [shape: bf16[2,32,256], index: 8, kind: output, shape index: {}]
  %s9 = sld [smem:[#allocation0]]
  $region42: #{attention_gate.1} parent=0
    _
  %s11 = ssub.s32 1, %s9
  %s12 = scalar_select 0, %s11, %s9
  %v13 = vstv %s7
  %14 = vst [vmem:[#allocation2] sm:$0x1] %v13
  // Predicated region
  $region2: #{attention_gate.1} parent=0 // pred_check
    _
  $region3: #{attention_gate.1} parent=0 // pred_check_branch
    %16 = sbr.rel (0) target = $region5
  $region4: #{attention_gate.1} parent=0 // pred_region
    _
  $region5: #{attention_gate.1} parent=0 // pred_fallthru
    _
  // Predicated region
  $region6: #{attention_gate.1} parent=0 // pred_check
    _
  $region7: #{attention_gate.1} parent=0 // pred_check_branch
    %18 = sbr.rel (0) target = $region9
  $region8: #{attention_gate.1} parent=0 // pred_region
    _
  $region9: #{attention_gate.1} parent=0 // pred_fallthru
    _
  // Predicated region
  $region10: #{attention_gate.1} parent=0 // pred_check
    _
  $region11: #{attention_gate.1} parent=0 // pred_check_branch
    %20 = sbr.rel (0) target = $region13
  $region12: #{attention_gate.1} parent=0 // pred_region
    _
  $region13: #{attention_gate.1} parent=0 // pred_fallthru
    _
  // Predicated region
  $region14: #{attention_gate.1} parent=0 // pred_check
    _
  $region15: #{attention_gate.1} parent=0 // pred_check_branch
    %22 = sbr.rel (0) target = $region17
  $region16: #{attention_gate.1} parent=0 // pred_region
    _
  $region17: #{attention_gate.1} parent=0 // pred_fallthru
    _
  // Predicated region
  $region18: #{attention_gate.1} parent=0 // pred_check
    _
  $region19: #{attention_gate.1} parent=0 // pred_check_branch
    %24 = sbr.rel (0) target = $region21
  $region20: #{attention_gate.1} parent=0 // pred_region
    _
  $region21: #{attention_gate.1} parent=0 // pred_fallthru
    _
  // Predicated region
  $region22: #{attention_gate.1} parent=0 // pred_check
    _
  $region23: #{attention_gate.1} parent=0 // pred_check_branch
    %26 = sbr.rel (0) target = $region25
  $region24: #{attention_gate.1} parent=0 // pred_region
    _
  $region25: #{attention_gate.1} parent=0 // pred_fallthru
    _
  // Predicated region
  $region26: #{attention_gate.1} parent=0 // pred_check
    _
  $region27: #{attention_gate.1} parent=0 // pred_check_branch
    %28 = sbr.rel (0) target = $region29
  $region28: #{attention_gate.1} parent=0 // pred_region
    _
  $region29: #{attention_gate.1} parent=0 // pred_fallthru
    _
  // Predicated region
  $region30: #{attention_gate.1} parent=0 // pred_check
    _
  $region31: #{attention_gate.1} parent=0 // pred_check_branch
    %30 = sbr.rel (0) target = $region33
  $region32: #{attention_gate.1} parent=0 // pred_region
    _
  $region33: #{attention_gate.1} parent=0 // pred_fallthru
    _
  %v32 = vld [vmem:[%s2] sm:$0xf]
  %v33 = vld [vmem:[%s2 + $0x4] sm:$0xf]
  %v34 = vld [vmem:[%s2 + $0x8] sm:$0xf]
  %v35 = vld [vmem:[%s2 + $0xc] sm:$0xf]
  %v36 = vld [vmem:[%s3] sm:$0xf]
  %v37 = vld [vmem:[%s3 + $0x4] sm:$0xf]
  %v38 = vld [vmem:[%s3 + $0x8] sm:$0xf]
  %v39 = vld [vmem:[%s3 + $0xc] sm:$0xf]
  %v40 = vld [vmem:[%s4] sm:$0xff]
  %v41 = vld [vmem:[%s4 + $0x8] sm:$0xff]
  %v42 = vld [vmem:[%s4 + $0x10] sm:$0xff]
  %v43 = vld [vmem:[%s4 + $0x18] sm:$0xff]
  %v44 = vld [vmem:[%s5] sm:$0xff]
  %v45 = vld [vmem:[%s5 + $0x8] sm:$0xff]
  %v46 = vld [vmem:[%s5 + $0x10] sm:$0xff]
  %v47 = vld [vmem:[%s5 + $0x18] sm:$0xff]
  %v48 = vld [vmem:[%s6] sm:$0xff]
  %v49 = vld [vmem:[%s6 + $0x8] sm:$0xff]
  %v50 = vld [vmem:[%s6 + $0x10] sm:$0xff]
  %v51 = vld [vmem:[%s6 + $0x18] sm:$0xff]
  %v52 = vld [vmem:[#allocation2] sm:$0x1]
  %v53 = vld [vmem:[%s0] sm:$0xff]
  %v54 = vld [vmem:[%s0 + $0x8] sm:$0xff]
  %v55 = vld [vmem:[%s0 + $0x10] sm:$0xff]
  %v56 = vld [vmem:[%s0 + $0x18] sm:$0xff]
  %v57 = vld [vmem:[%s0 + $0x20] sm:$0xff]
  %v58 = vld [vmem:[%s0 + $0x28] sm:$0xff]
  %v59 = vld [vmem:[%s0 + $0x30] sm:$0xff]
  %v60 = vld [vmem:[%s0 + $0x38] sm:$0xff]
  %v61 = vpack.c.bf16 %v55, %v53
  %v62 = vpack.c.bf16 %v56, %v54
  %v63 = vpack.c.bf16 %v59, %v57
  %v64 = vpack.c.bf16 %v60, %v58
  %v65 = vld [vmem:[%s1] sm:$0xff]
  %v66 = vld [vmem:[%s1 + $0x8] sm:$0xff]
  %v67 = vld [vmem:[%s1 + $0x10] sm:$0xff]
  %v68 = vld [vmem:[%s1 + $0x18] sm:$0xff]
  %v69 = vld [vmem:[%s1 + $0x20] sm:$0xff]
  %v70 = vld [vmem:[%s1 + $0x28] sm:$0xff]
  %v71 = vld [vmem:[%s1 + $0x30] sm:$0xff]
  %v72 = vld [vmem:[%s1 + $0x38] sm:$0xff]
  %v73 = vpack.c.bf16 %v67, %v65
  %v74 = vpack.c.bf16 %v68, %v66
  %v75 = vpack.c.bf16 %v71, %v69
  %v76 = vpack.c.bf16 %v72, %v70
  %78 = vset.pattern.permute.xlu0 0
  %79 = vperm.xlu0 %78, %v40
  %v80 = vpop.permute.xlu0 %79
  %83 = vset.pattern.permute.xlu0 0
  %84 = vperm.xlu0 %83, %v41
  %v85 = vpop.permute.xlu0 %84
  %88 = vset.pattern.permute.xlu0 0
  %89 = vperm.xlu0 %88, %v42
  %v90 = vpop.permute.xlu0 %89
  %93 = vset.pattern.permute.xlu0 0
  %94 = vperm.xlu0 %93, %v43
  %v95 = vpop.permute.xlu0 %94
  %v101 = vunpack.c.l.b16 %v32
  %v102 = vunpack.c.l.b16 %v33
  %v103 = vunpack.c.l.b16 %v34
  %v104 = vunpack.c.l.b16 %v35
  %v105 = vpack.c.b16 %v102, %v101
  %v106 = vpack.c.b16 %v104, %v103
  %vm107 = vcmask 261120
  %v109 = vsel %vm107, %v105, 0
  %v112 = vsel %vm107, %v106, 0
  %114 = vmatpush.bf16.msra.mxu0 0
  %115 = vmatpush.bf16.msra.mxu0 0
  %116 = vmatpush.bf16.msra.mxu0 0
  %117 = vmatpush.bf16.msra.mxu0 0
  %118 = vmatpush.bf16.msra.mxu0 0
  %119 = vmatpush.bf16.msra.mxu0 0
  %120 = vmatpush.bf16.msra.mxu0 %v63
  %121 = vmatpush.bf16.msra.mxu0 %v61
  %122 = vmatmul.bf16.gmra.mxu0 %v109
  %v123 = vpop.f32.mrf.mxu0
  %v124 = vadd.f32 %v80, %v123
  %v125 = vpop.f32.mrf.mxu0
  %v126 = vadd.f32 %v85, %v125
  %127 = vmatmul.bf16.gmra.mxu0 %v112
  %v128 = vpop.f32.mrf.mxu0
  %v129 = vadd.f32 %v90, %v128
  %v130 = vpop.f32.mrf.mxu0
  %v131 = vadd.f32 %v95, %v130
  %132 = vdwg.mxu0
  %133 = vmatpush.bf16.msra.mxu0 0
  %134 = vmatpush.bf16.msra.mxu0 0
  %135 = vmatpush.bf16.msra.mxu0 0
  %136 = vmatpush.bf16.msra.mxu0 0
  %137 = vmatpush.bf16.msra.mxu0 0
  %138 = vmatpush.bf16.msra.mxu0 0
  %139 = vmatpush.bf16.msra.mxu0 %v64
  %140 = vmatpush.bf16.msra.mxu0 %v62
  %141 = vmatmul.bf16.gmra.mxu0 %v109
  %v142 = vpop.f32.mrf.mxu0
  %v143 = vadd.f32 %v80, %v142
  %v144 = vpop.f32.mrf.mxu0
  %v145 = vadd.f32 %v85, %v144
  %146 = vmatmul.bf16.gmra.mxu0 %v112
  %v147 = vpop.f32.mrf.mxu0
  %v148 = vadd.f32 %v90, %v147
  %v149 = vpop.f32.mrf.mxu0
  %v150 = vadd.f32 %v95, %v149
  %151 = vdwg.mxu0
  %153 = vset.pattern.permute.xlu0 0
  %154 = vperm.xlu0 %153, %v44
  %v155 = vpop.permute.xlu0 %154
  %158 = vset.pattern.permute.xlu0 0
  %159 = vperm.xlu0 %158, %v45
  %v160 = vpop.permute.xlu0 %159
  %163 = vset.pattern.permute.xlu0 0
  %164 = vperm.xlu0 %163, %v46
  %v165 = vpop.permute.xlu0 %164
  %168 = vset.pattern.permute.xlu0 0
  %169 = vperm.xlu0 %168, %v47
  %v170 = vpop.permute.xlu0 %169
  %v176 = vunpack.c.l.b16 %v36
  %v177 = vunpack.c.l.b16 %v37
  %v178 = vunpack.c.l.b16 %v38
  %v179 = vunpack.c.l.b16 %v39
  %v180 = vpack.c.b16 %v177, %v176
  %v181 = vpack.c.b16 %v179, %v178
  %v183 = vsel %vm107, %v180, 0
  %v186 = vsel %vm107, %v181, 0
  %188 = vmatpush.bf16.msra.mxu0 0
  %189 = vmatpush.bf16.msra.mxu0 0
  %190 = vmatpush.bf16.msra.mxu0 0
  %191 = vmatpush.bf16.msra.mxu0 0
  %192 = vmatpush.bf16.msra.mxu0 0
  %193 = vmatpush.bf16.msra.mxu0 0
  %194 = vmatpush.bf16.msra.mxu0 %v75
  %195 = vmatpush.bf16.msra.mxu0 %v73
  %196 = vmatmul.bf16.gmra.mxu0 %v183
  %v197 = vpop.f32.mrf.mxu0
  %v198 = vadd.f32 %v155, %v197
  %v199 = vpop.f32.mrf.mxu0
  %v200 = vadd.f32 %v160, %v199
  %201 = vmatmul.bf16.gmra.mxu0 %v186
  %v202 = vpop.f32.mrf.mxu0
  %v203 = vadd.f32 %v165, %v202
  %v204 = vpop.f32.mrf.mxu0
  %v205 = vadd.f32 %v170, %v204
  %206 = vdwg.mxu0
  %207 = vmatpush.bf16.msra.mxu0 0
  %208 = vmatpush.bf16.msra.mxu0 0
  %209 = vmatpush.bf16.msra.mxu0 0
  %210 = vmatpush.bf16.msra.mxu0 0
  %211 = vmatpush.bf16.msra.mxu0 0
  %212 = vmatpush.bf16.msra.mxu0 0
  %213 = vmatpush.bf16.msra.mxu0 %v76
  %214 = vmatpush.bf16.msra.mxu0 %v74
  %215 = vmatmul.bf16.gmra.mxu0 %v183
  %v216 = vpop.f32.mrf.mxu0
  %v217 = vadd.f32 %v155, %v216
  %v218 = vpop.f32.mrf.mxu0
  %v219 = vadd.f32 %v160, %v218
  %220 = vmatmul.bf16.gmra.mxu0 %v186
  %v221 = vpop.f32.mrf.mxu0
  %v222 = vadd.f32 %v165, %v221
  %v223 = vpop.f32.mrf.mxu0
  %v224 = vadd.f32 %v170, %v223
  %225 = vdwg.mxu0
  %v226 = vadd.f32 %v124, %v198
  %v227 = vadd.f32 %v143, %v217
  %v228 = vadd.f32 %v126, %v200
  %v229 = vadd.f32 %v145, %v219
  %v230 = vadd.f32 %v129, %v203
  %v231 = vadd.f32 %v148, %v222
  %v232 = vadd.f32 %v131, %v205
  %v233 = vadd.f32 %v150, %v224
  %v234 = vmax.f32 %v226, 0.0
  %v235 = vmax.f32 %v227, 0.0
  %v236 = vmax.f32 %v228, 0.0
  %v237 = vmax.f32 %v229, 0.0
  %v238 = vmax.f32 %v230, 0.0
  %v239 = vmax.f32 %v231, 0.0
  %v240 = vmax.f32 %v232, 0.0
  %v241 = vmax.f32 %v233, 0.0
  %243 = vset.pattern.permute.xlu0 0
  %244 = vperm.xlu0 %243, %v48
  %v245 = vpop.permute.xlu0 %244
  %248 = vset.pattern.permute.xlu0 0
  %249 = vperm.xlu0 %248, %v49
  %v250 = vpop.permute.xlu0 %249
  %253 = vset.pattern.permute.xlu0 0
  %254 = vperm.xlu0 %253, %v50
  %v255 = vpop.permute.xlu0 %254
  %258 = vset.pattern.permute.xlu0 0
  %259 = vperm.xlu0 %258, %v51
  %v260 = vpop.permute.xlu0 %259
  %v262 = vmul.f32 %v234, %v245
  %v263 = vmul.f32 %v235, %v245
  %v264 = vmul.f32 %v236, %v250
  %v265 = vmul.f32 %v237, %v250
  %v266 = vmul.f32 %v238, %v255
  %v267 = vmul.f32 %v239, %v255
  %v268 = vmul.f32 %v240, %v260
  %v269 = vmul.f32 %v241, %v260
  %v270 = vadd.f32 %v262, %v264
  %v271 = vadd.f32 %v270, %v266
  %v272 = vadd.f32 %v271, %v268
  %v273 = vrot.slane %v272, 4
  %v274 = vadd.f32 %v272, %v273
  %v275 = vrot.slane %v274, 2
  %v276 = vadd.f32 %v274, %v275
  %v277 = vrot.slane %v276, 1
  %v278 = vadd.f32 %v276, %v277
  %v279 = vadd.f32 %v263, %v265
  %v280 = vadd.f32 %v279, %v267
  %v281 = vadd.f32 %v280, %v269
  %v282 = vrot.slane %v281, 4
  %v283 = vadd.f32 %v281, %v282
  %v284 = vrot.slane %v283, 2
  %v285 = vadd.f32 %v283, %v284
  %v286 = vrot.slane %v285, 1
  %v287 = vadd.f32 %v285, %v286
  %289 = vset.pattern.permute.xlu0 0
  %290 = vperm.xlu0 %289, %v52
  %v291 = vpop.permute.xlu0 %290
  %v293 = vperm.slane %v291, 0
  %v294 = vadd.f32 %v278, %v293
  %v295 = vadd.f32 %v287, %v293
  %v296 = vxor.u32 %v294, 2147483648
  %v297 = vxor.u32 %v295, 2147483648
  %v298 = vmul.f32 %v296, 1.442695
  %v299 = vpow.pop %v298
  %v300 = vmul.f32 %v297, 1.442695
  %v301 = vpow.pop %v300
  %v302 = vadd.f32 %v299, 1.0
  %v303 = vadd.f32 %v301, 1.0
  %v304 = vrcp.pop %v302
  %v305 = vmul.f32 %v302, %v304
  %v306 = vsub.f32 1.0, %v305
  %v307 = vmul.f32 %v304, %v306
  %v308 = vadd.f32 %v304, %v307
  %vm309 = vweird.f32 %v302
  %vm310 = vweird.f32 %v304
  %vm311 = vmor %vm309, %vm310
  %v312 = vsel %vm311, %v304, %v308
  %v313 = vand.u32 2147483647, %v302
  %vm314 = vcmp.eq.f32.partialorder %v313, 8.507059e+37
  %v315 = vand.u32 %v302, 2147483648
  %v316 = vor.u32 1.1754944e-38, %v315
  %v317 = vsel %vm314, %v316, %v312
  %v318 = vmul.f32 1.0, %v317
  %v319 = vrcp.pop %v303
  %v320 = vmul.f32 %v303, %v319
  %v321 = vsub.f32 1.0, %v320
  %v322 = vmul.f32 %v319, %v321
  %v323 = vadd.f32 %v319, %v322
  %vm324 = vweird.f32 %v303
  %vm325 = vweird.f32 %v319
  %vm326 = vmor %vm324, %vm325
  %v327 = vsel %vm326, %v319, %v323
  %v328 = vand.u32 2147483647, %v303
  %vm329 = vcmp.eq.f32.partialorder %v328, 8.507059e+37
  %v330 = vand.u32 %v303, 2147483648
  %v331 = vor.u32 1.1754944e-38, %v330
  %v332 = vsel %vm329, %v331, %v327
  %v333 = vmul.f32 1.0, %v332
  %v334 = vmul.f32 %v198, %v318
  %v335 = vmul.f32 %v217, %v333
  %v336 = vmul.f32 %v200, %v318
  %v337 = vmul.f32 %v219, %v333
  %v338 = vmul.f32 %v203, %v318
  %v339 = vmul.f32 %v222, %v333
  %v340 = vmul.f32 %v205, %v318
  %v341 = vmul.f32 %v224, %v333
  %v342 = vpack.c.bf16 %v335, %v334
  %v343 = vpack.c.bf16 %v337, %v336
  %v344 = vpack.c.bf16 %v339, %v338
  %v345 = vpack.c.bf16 %v341, %v340
  %346 = vst [vmem:[%s8] sm:$0xff] %v342
  %347 = vst [vmem:[%s8 + $0x8] sm:$0xff] %v343
  %348 = vst [vmem:[%s8 + $0x10] sm:$0xff] %v344
  %349 = vst [vmem:[%s8 + $0x18] sm:$0xff] %v345
  %s350 = scalar_lea.vmem %s0, 64
  %v351 = vld [vmem:[%s350] sm:$0xff]
  %v352 = vld [vmem:[%s350 + $0x8] sm:$0xff]
  %v353 = vld [vmem:[%s350 + $0x10] sm:$0xff]
  %v354 = vld [vmem:[%s350 + $0x18] sm:$0xff]
  %v355 = vld [vmem:[%s350 + $0x20] sm:$0xff]
  %v356 = vld [vmem:[%s350 + $0x28] sm:$0xff]
  %v357 = vld [vmem:[%s350 + $0x30] sm:$0xff]
  %v358 = vld [vmem:[%s350 + $0x38] sm:$0xff]
  %v359 = vpack.c.bf16 %v353, %v351
  %v360 = vpack.c.bf16 %v354, %v352
  %v361 = vpack.c.bf16 %v357, %v355
  %v362 = vpack.c.bf16 %v358, %v356
  %s363 = scalar_lea.vmem %s1, 64
  %v364 = vld [vmem:[%s363] sm:$0xff]
  %v365 = vld [vmem:[%s363 + $0x8] sm:$0xff]
  %v366 = vld [vmem:[%s363 + $0x10] sm:$0xff]
  %v367 = vld [vmem:[%s363 + $0x18] sm:$0xff]
  %v368 = vld [vmem:[%s363 + $0x20] sm:$0xff]
  %v369 = vld [vmem:[%s363 + $0x28] sm:$0xff]
  %v370 = vld [vmem:[%s363 + $0x30] sm:$0xff]
  %v371 = vld [vmem:[%s363 + $0x38] sm:$0xff]
  %v372 = vpack.c.bf16 %v366, %v364
  %v373 = vpack.c.bf16 %v367, %v365
  %v374 = vpack.c.bf16 %v370, %v368
  %v375 = vpack.c.bf16 %v371, %v369
  %376 = vmatpush.bf16.msra.mxu0 0
  %377 = vmatpush.bf16.msra.mxu0 0
  %378 = vmatpush.bf16.msra.mxu0 0
  %379 = vmatpush.bf16.msra.mxu0 0
  %380 = vmatpush.bf16.msra.mxu0 0
  %381 = vmatpush.bf16.msra.mxu0 0
  %382 = vmatpush.bf16.msra.mxu0 %v361
  %383 = vmatpush.bf16.msra.mxu0 %v359
  %384 = vmatmul.bf16.gmra.mxu0 %v109
  %v385 = vpop.f32.mrf.mxu0
  %v386 = vadd.f32 %v80, %v385
  %v387 = vpop.f32.mrf.mxu0
  %v388 = vadd.f32 %v85, %v387
  %389 = vmatmul.bf16.gmra.mxu0 %v112
  %v390 = vpop.f32.mrf.mxu0
  %v391 = vadd.f32 %v90, %v390
  %v392 = vpop.f32.mrf.mxu0
  %v393 = vadd.f32 %v95, %v392
  %394 = vdwg.mxu0
  %395 = vmatpush.bf16.msra.mxu0 0
  %396 = vmatpush.bf16.msra.mxu0 0
  %397 = vmatpush.bf16.msra.mxu0 0
  %398 = vmatpush.bf16.msra.mxu0 0
  %399 = vmatpush.bf16.msra.mxu0 0
  %400 = vmatpush.bf16.msra.mxu0 0
  %401 = vmatpush.bf16.msra.mxu0 %v362
  %402 = vmatpush.bf16.msra.mxu0 %v360
  %403 = vmatmul.bf16.gmra.mxu0 %v109
  %v404 = vpop.f32.mrf.mxu0
  %v405 = vadd.f32 %v80, %v404
  %v406 = vpop.f32.mrf.mxu0
  %v407 = vadd.f32 %v85, %v406
  %408 = vmatmul.bf16.gmra.mxu0 %v112
  %v409 = vpop.f32.mrf.mxu0
  %v410 = vadd.f32 %v90, %v409
  %v411 = vpop.f32.mrf.mxu0
  %v412 = vadd.f32 %v95, %v411
  %413 = vdwg.mxu0
  %414 = vmatpush.bf16.msra.mxu0 0
  %415 = vmatpush.bf16.msra.mxu0 0
  %416 = vmatpush.bf16.msra.mxu0 0
  %417 = vmatpush.bf16.msra.mxu0 0
  %418 = vmatpush.bf16.msra.mxu0 0
  %419 = vmatpush.bf16.msra.mxu0 0
  %420 = vmatpush.bf16.msra.mxu0 %v374
  %421 = vmatpush.bf16.msra.mxu0 %v372
  %422 = vmatmul.bf16.gmra.mxu0 %v183
  %v423 = vpop.f32.mrf.mxu0
  %v424 = vadd.f32 %v155, %v423
  %v425 = vpop.f32.mrf.mxu0
  %v426 = vadd.f32 %v160, %v425
  %427 = vmatmul.bf16.gmra.mxu0 %v186
  %v428 = vpop.f32.mrf.mxu0
  %v429 = vadd.f32 %v165, %v428
  %v430 = vpop.f32.mrf.mxu0
  %v431 = vadd.f32 %v170, %v430
  %432 = vdwg.mxu0
  %433 = vmatpush.bf16.msra.mxu0 0
  %434 = vmatpush.bf16.msra.mxu0 0
  %435 = vmatpush.bf16.msra.mxu0 0
  %436 = vmatpush.bf16.msra.mxu0 0
  %437 = vmatpush.bf16.msra.mxu0 0
  %438 = vmatpush.bf16.msra.mxu0 0
  %439 = vmatpush.bf16.msra.mxu0 %v375
  %440 = vmatpush.bf16.msra.mxu0 %v373
  %441 = vmatmul.bf16.gmra.mxu0 %v183
  %v442 = vpop.f32.mrf.mxu0
  %v443 = vadd.f32 %v155, %v442
  %v444 = vpop.f32.mrf.mxu0
  %v445 = vadd.f32 %v160, %v444
  %446 = vmatmul.bf16.gmra.mxu0 %v186
  %v447 = vpop.f32.mrf.mxu0
  %v448 = vadd.f32 %v165, %v447
  %v449 = vpop.f32.mrf.mxu0
  %v450 = vadd.f32 %v170, %v449
  %451 = vdwg.mxu0
  %v452 = vadd.f32 %v386, %v424
  %v453 = vadd.f32 %v405, %v443
  %v454 = vadd.f32 %v388, %v426
  %v455 = vadd.f32 %v407, %v445
  %v456 = vadd.f32 %v391, %v429
  %v457 = vadd.f32 %v410, %v448
  %v458 = vadd.f32 %v393, %v431
  %v459 = vadd.f32 %v412, %v450
  %v460 = vmax.f32 %v452, 0.0
  %v461 = vmax.f32 %v453, 0.0
  %v462 = vmax.f32 %v454, 0.0
  %v463 = vmax.f32 %v455, 0.0
  %v464 = vmax.f32 %v456, 0.0
  %v465 = vmax.f32 %v457, 0.0
  %v466 = vmax.f32 %v458, 0.0
  %v467 = vmax.f32 %v459, 0.0
  %v468 = vmul.f32 %v460, %v245
  %v469 = vmul.f32 %v461, %v245
  %v470 = vmul.f32 %v462, %v250
  %v471 = vmul.f32 %v463, %v250
  %v472 = vmul.f32 %v464, %v255
  %v473 = vmul.f32 %v465, %v255
  %v474 = vmul.f32 %v466, %v260
  %v475 = vmul.f32 %v467, %v260
  %v476 = vadd.f32 %v468, %v470
  %v477 = vadd.f32 %v476, %v472
  %v478 = vadd.f32 %v477, %v474
  %v479 = vrot.slane %v478, 4
  %v480 = vadd.f32 %v478, %v479
  %v481 = vrot.slane %v480, 2
  %v482 = vadd.f32 %v480, %v481
  %v483 = vrot.slane %v482, 1
  %v484 = vadd.f32 %v482, %v483
  %v485 = vadd.f32 %v469, %v471
  %v486 = vadd.f32 %v485, %v473
  %v487 = vadd.f32 %v486, %v475
  %v488 = vrot.slane %v487, 4
  %v489 = vadd.f32 %v487, %v488
  %v490 = vrot.slane %v489, 2
  %v491 = vadd.f32 %v489, %v490
  %v492 = vrot.slane %v491, 1
  %v493 = vadd.f32 %v491, %v492
  %v494 = vadd.f32 %v484, %v293
  %v495 = vadd.f32 %v493, %v293
  %v496 = vxor.u32 %v494, 2147483648
  %v497 = vxor.u32 %v495, 2147483648
  %v498 = vmul.f32 %v496, 1.442695
  %v499 = vpow.pop %v498
  %v500 = vmul.f32 %v497, 1.442695
  %v501 = vpow.pop %v500
  %v502 = vadd.f32 %v499, 1.0
  %v503 = vadd.f32 %v501, 1.0
  %v504 = vrcp.pop %v502
  %v505 = vmul.f32 %v502, %v504
  %v506 = vsub.f32 1.0, %v505
  %v507 = vmul.f32 %v504, %v506
  %v508 = vadd.f32 %v504, %v507
  %vm509 = vweird.f32 %v502
  %vm510 = vweird.f32 %v504
  %vm511 = vmor %vm509, %vm510
  %v512 = vsel %vm511, %v504, %v508
  %v513 = vand.u32 2147483647, %v502
  %vm514 = vcmp.eq.f32.partialorder %v513, 8.507059e+37
  %v515 = vand.u32 %v502, 2147483648
  %v516 = vor.u32 1.1754944e-38, %v515
  %v517 = vsel %vm514, %v516, %v512
  %v518 = vmul.f32 1.0, %v517
  %v519 = vrcp.pop %v503
  %v520 = vmul.f32 %v503, %v519
  %v521 = vsub.f32 1.0, %v520
  %v522 = vmul.f32 %v519, %v521
  %v523 = vadd.f32 %v519, %v522
  %vm524 = vweird.f32 %v503
  %vm525 = vweird.f32 %v519
  %vm526 = vmor %vm524, %vm525
  %v527 = vsel %vm526, %v519, %v523
  %v528 = vand.u32 2147483647, %v503
  %vm529 = vcmp.eq.f32.partialorder %v528, 8.507059e+37
  %v530 = vand.u32 %v503, 2147483648
  %v531 = vor.u32 1.1754944e-38, %v530
  %v532 = vsel %vm529, %v531, %v527
  %v533 = vmul.f32 1.0, %v532
  %v534 = vmul.f32 %v424, %v518
  %v535 = vmul.f32 %v443, %v533
  %v536 = vmul.f32 %v426, %v518
  %v537 = vmul.f32 %v445, %v533
  %v538 = vmul.f32 %v429, %v518
  %v539 = vmul.f32 %v448, %v533
  %v540 = vmul.f32 %v431, %v518
  %v541 = vmul.f32 %v450, %v533
  %v542 = vpack.c.bf16 %v535, %v534
  %v543 = vpack.c.bf16 %v537, %v536
  %v544 = vpack.c.bf16 %v539, %v538
  %v545 = vpack.c.bf16 %v541, %v540
  %s546 = scalar_lea.vmem %s8, 32
  %547 = vst [vmem:[%s546] sm:$0xff] %v542
  %548 = vst [vmem:[%s546 + $0x8] sm:$0xff] %v543
  %549 = vst [vmem:[%s546 + $0x10] sm:$0xff] %v544
  %550 = vst [vmem:[%s546 + $0x18] sm:$0xff] %v545
  // Predicated region
  $region34: #{attention_gate.1} parent=0 // pred_check
    _
  $region35: #{attention_gate.1} parent=0 // pred_check_branch
    %552 = sbr.rel (0) target = $region37
  $region36: #{attention_gate.1} parent=0 // pred_region
    _
  $region37: #{attention_gate.1} parent=0 // pred_fallthru
    _
  // Predicated region
  $region38: #{attention_gate.1} parent=0 // pred_check
    _
  $region39: #{attention_gate.1} parent=0 // pred_check_branch
    %554 = sbr.rel (0) target = $region41
  $region40: #{attention_gate.1} parent=0 // pred_region
    _
  $region41: #{attention_gate.1} parent=0 // pred_fallthru
    _

</llo_original>
